<compile_context>
chip_gen: v7x
topology: tpu7x:2x2x1
jax: 0.10.0
libtpu: 0.0.40
codegen_flags: <defaults>
</compile_context>

<pallas_src>
import jax
import jax.numpy as jnp
from jax.experimental import pallas as pl
from jax.experimental.pallas import tpu as pltpu


def _disc_lstm_kernel(ids_ref, emb_ref, h0_ref, c0_ref, wcat_ref, b_ref,
                      wlin_ref, blin_ref,
                      logp_ref, h_ref, c_ref,
                      xh_ref):
    B, H = h0_ref.shape

    # ---- In-kernel embedding gather + concat [embedded | h0] -> (B, 2H) scratch.
    # ids live in SMEM; the table is (V, 1, H) so a dynamic index on the
    # (untiled) leading dim yields one (1, H) row per token.
    for bi in range(B):                         # B is small & static -> unrolled
        tok = ids_ref[bi]                       # scalar token id from SMEM
        xh_ref[pl.ds(bi, 1), pl.ds(0, H)] = emb_ref[tok]
    xh_ref[:, pl.ds(H, H)] = h0_ref[...]

    # ---- Single fused gate matmul on the MXU: (B, 2H) @ (2H, 4H).
    # (For bit-level parity with f32 PyTorch one could add
    #  precision=jax.lax.Precision.HIGHEST; default precision drift is tiny.)
    gates = jnp.dot(xh_ref[...], wcat_ref[...],
                    preferred_element_type=jnp.float32) + b_ref[...]

    # PyTorch LSTM gate order: input, forget, cell (g), output.
    i_g = jax.nn.sigmoid(gates[:, 0 * H:1 * H])
    f_g = jax.nn.sigmoid(gates[:, 1 * H:2 * H])
    g_g = jnp.tanh(gates[:, 2 * H:3 * H])
    o_g = jax.nn.sigmoid(gates[:, 3 * H:4 * H])

    c_new = f_g * c0_ref[...] + i_g * g_g
    h_new = o_g * jnp.tanh(c_new)

    # ---- Final linear + stable LogSoftmax(dim=1).
    y = jnp.dot(h_new, wlin_ref[...],
                preferred_element_type=jnp.float32) + blin_ref[...]
    m = jnp.max(y, axis=1, keepdims=True)
    lse = jnp.log(jnp.sum(jnp.exp(y - m), axis=1, keepdims=True)) + m

    logp_ref[...] = y - lse
    h_ref[...] = h_new
    c_ref[...] = c_new


def _vmem_full_spec(shape):
    nd = len(shape)
    return pl.BlockSpec(shape, lambda *_, _nd=nd: (0,) * _nd)


def discriminator_lstm_forward(x_ids, hidden, cell, params):
    """Mirrors DiscriminatorLSTM.forward (num_layers=1, unidirectional, dropout=0).

    x_ids  : (B,)   int32 token ids
    hidden : (1, B, H)
    cell   : (1, B, H)
    Returns (log_probs (B,O), lstm_output (B,1,H), hidden (1,B,H), cell (1,B,H)).
    """
    emb_table = params["embedding"]            # (V, H)
    w_cat_t = params["w_cat_t"]                # (2H, 4H)
    b = params["b"]                            # (1, 4H)
    w_lin_t = params["w_lin_t"]                # (H, O)
    b_lin = params["b_lin"]                    # (1, O)

    B = x_ids.shape[0]
    V, H = emb_table.shape
    O = w_lin_t.shape[1]

    h0 = hidden[0]                             # (B, H)
    c0 = cell[0]                               # (B, H)
    emb3 = emb_table.reshape(V, 1, H)          # leading-dim-indexable rows

    inputs = (x_ids.astype(jnp.int32), emb3, h0, c0, w_cat_t, b, w_lin_t, b_lin)

    out_shapes = (
        jax.ShapeDtypeStruct((B, O), jnp.float32),   # log-softmax
        jax.ShapeDtypeStruct((B, H), jnp.float32),   # new hidden (== lstm_output)
        jax.ShapeDtypeStruct((B, H), jnp.float32),   # new cell
    )

    in_specs = [pl.BlockSpec(memory_space=pltpu.MemorySpace.SMEM)]   # token ids
    in_specs += [_vmem_full_spec(a.shape) for a in inputs[1:]]

    # TODO(synk): if this step is driven by an outer recurrent rollout, move the
    # time loop inside one pallas_call (grid=(T,), weights VMEM-resident, h/c in
    # scratch) instead of one pallas_call per timestep.
    logp, h_new, c_new = pl.pallas_call(
        _disc_lstm_kernel,
        out_shape=out_shapes,
        in_specs=in_specs,
        out_specs=tuple(_vmem_full_spec(s.shape) for s in out_shapes),
        scratch_shapes=[pltpu.VMEM((B, 2 * H), jnp.float32)],
        # In-place state update: h0 buffer -> h', c0 buffer -> c'.
        input_output_aliases={2: 1, 3: 2},
    )(*inputs)

    return (
        logp,
        h_new.reshape(B, 1, H),    # lstm_output (seq_len == 1, num_layers == 1)
        h_new.reshape(1, B, H),
        c_new.reshape(1, B, H),
    )


def _reference_forward(x_ids, hidden, cell, params):
    """Pure-JAX reference of the same math (for correctness checking)."""
    emb = params["embedding"][x_ids]                       # (B, H)
    h0, c0 = hidden[0], cell[0]
    B, H = h0.shape
    xh = jnp.concatenate([emb, h0], axis=1)
    gates = xh @ params["w_cat_t"] + params["b"]
    i_g = jax.nn.sigmoid(gates[:, 0 * H:1 * H])
    f_g = jax.nn.sigmoid(gates[:, 1 * H:2 * H])
    g_g = jnp.tanh(gates[:, 2 * H:3 * H])
    o_g = jax.nn.sigmoid(gates[:, 3 * H:4 * H])
    c_new = f_g * c0 + i_g * g_g
    h_new = o_g * jnp.tanh(c_new)
    y = h_new @ params["w_lin_t"] + params["b_lin"]
    logp = jax.nn.log_softmax(y, axis=1)
    return (logp, h_new.reshape(B, 1, H),
            h_new.reshape(1, B, H), c_new.reshape(1, B, H))


def init_params(key, vocab_size, hidden_size, output_size):
    """Deterministic synthetic parameter init matching the module's shapes."""
    k = jax.random.split(key, 7)
    H, V, O = hidden_size, vocab_size, output_size
    bound = 1.0 / jnp.sqrt(jnp.float32(H))

    emb = jax.random.normal(k[0], (V, H), jnp.float32)
    w_ih = jax.random.uniform(k[1], (4 * H, H), jnp.float32, -bound, bound)
    w_hh = jax.random.uniform(k[2], (4 * H, H), jnp.float32, -bound, bound)
    b_ih = jax.random.uniform(k[3], (4 * H,), jnp.float32, -bound, bound)
    b_hh = jax.random.uniform(k[4], (4 * H,), jnp.float32, -bound, bound)
    w_lin = jax.random.uniform(k[5], (O, H), jnp.float32, -bound, bound)
    b_lin = jax.random.uniform(k[6], (O,), jnp.float32, -bound, bound)

    return {
        "embedding": emb,                                      # (V, H)
        "w_cat_t": jnp.concatenate([w_ih.T, w_hh.T], axis=0),  # (2H, 4H)
        "b": (b_ih + b_hh).reshape(1, 4 * H),                  # (1, 4H)
        "w_lin_t": w_lin.T,                                    # (H, O)
        "b_lin": b_lin.reshape(1, O),                          # (1, O)
    }


if __name__ == "__main__":
    # Small shapes consistent with the module: vocab (input_size)=16,
    # hidden_size=32, output_size=8, batch_size=2, num_layers=1, unidirectional.
    VOCAB, HIDDEN, OUT, BATCH = 16, 32, 8, 2

    key = jax.random.PRNGKey(0)
    pkey, xkey = jax.random.split(key)
    params = init_params(pkey, VOCAB, HIDDEN, OUT)

    x_ids = jax.random.randint(xkey, (BATCH,), 0, VOCAB, dtype=jnp.int32)
    hidden0 = jnp.zeros((1, BATCH, HIDDEN), jnp.float32)   # init_hidden_state()
    cell0 = jnp.zeros((1, BATCH, HIDDEN), jnp.float32)     # init_cell_state()

    fwd = jax.jit(discriminator_lstm_forward)
    logp, lstm_out, h_new, c_new = fwd(x_ids, hidden0, cell0, params)
    jax.block_until_ready((logp, lstm_out, h_new, c_new))

    assert logp.shape == (BATCH, OUT)
    assert lstm_out.shape == (BATCH, 1, HIDDEN)
    assert h_new.shape == (1, BATCH, HIDDEN)
    assert c_new.shape == (1, BATCH, HIDDEN)

    # LogSoftmax sanity: rows of exp(logp) sum to 1.
    assert bool(jnp.allclose(jnp.exp(logp).sum(axis=1), 1.0, atol=1e-4))

    # Numerical check against a pure-JAX reference of the same math.
    ref = _reference_forward(x_ids, hidden0, cell0, params)
    for got, want in zip((logp, lstm_out, h_new, c_new), ref):
        assert bool(jnp.allclose(got, want, atol=2e-2, rtol=2e-2))

    print("KERNEL_OK")
</pallas_src>

<mosaic_0001>
module attributes {stable_mosaic.version = 11 : i64} {
  func.func @_disc_lstm_kernel(%arg0: memref<2xi32, #tpu.memory_space<smem>>, %arg1: memref<16x1x32xf32, #tpu.memory_space<vmem>>, %arg2: memref<2x32xf32, #tpu.memory_space<vmem>>, %arg3: memref<2x32xf32, #tpu.memory_space<vmem>>, %arg4: memref<64x128xf32, #tpu.memory_space<vmem>>, %arg5: memref<1x128xf32, #tpu.memory_space<vmem>>, %arg6: memref<32x8xf32, #tpu.memory_space<vmem>>, %arg7: memref<1x8xf32, #tpu.memory_space<vmem>>, %arg8: memref<2x8xf32, #tpu.memory_space<vmem>>, %arg9: memref<2x32xf32, #tpu.memory_space<vmem>>, %arg10: memref<2x32xf32, #tpu.memory_space<vmem>>, %arg11: memref<2x64xf32, #tpu.memory_space<vmem>>) attributes {dimension_semantics = [], scalar_prefetch = 0 : i64, scratch_operands = 1 : i64, tpu.core_type = #tpu.core_type<tc>} {
    %c0 = arith.constant 0 : index
    %0 = memref.load %arg0[%c0] : memref<2xi32, #tpu.memory_space<smem>>
    %1 = arith.index_cast %0 : i32 to index
    %c0_0 = arith.constant 0 : index
    %c0_1 = arith.constant 0 : index
    %2 = vector.load %arg1[%1, %c0_0, %c0_1] : memref<16x1x32xf32, #tpu.memory_space<vmem>>, vector<1x1x32xf32>
    %3 = vector.shape_cast %2 : vector<1x1x32xf32> to vector<1x32xf32>
    %c0_2 = arith.constant 0 : index
    %c0_3 = arith.constant 0 : index
    %4 = vector.load %arg11[%c0_2, %c0_3] : memref<2x64xf32, #tpu.memory_space<vmem>>, vector<1x32xf32>
    tpu.vector_store %arg11[%c0_2, %c0_3], %3 {strides = array<i32>} : memref<2x64xf32, #tpu.memory_space<vmem>>, vector<1x32xf32>,
    %c1 = arith.constant 1 : index
    %5 = memref.load %arg0[%c1] : memref<2xi32, #tpu.memory_space<smem>>
    %6 = arith.index_cast %5 : i32 to index
    %c0_4 = arith.constant 0 : index
    %c0_5 = arith.constant 0 : index
    %7 = vector.load %arg1[%6, %c0_4, %c0_5] : memref<16x1x32xf32, #tpu.memory_space<vmem>>, vector<1x1x32xf32>
    %8 = vector.shape_cast %7 : vector<1x1x32xf32> to vector<1x32xf32>
    %c1_6 = arith.constant 1 : index
    %c0_7 = arith.constant 0 : index
    %9 = vector.load %arg11[%c1_6, %c0_7] : memref<2x64xf32, #tpu.memory_space<vmem>>, vector<1x32xf32>
    tpu.vector_store %arg11[%c1_6, %c0_7], %8 {strides = array<i32>} : memref<2x64xf32, #tpu.memory_space<vmem>>, vector<1x32xf32>,
    %c0_8 = arith.constant 0 : index
    %c0_9 = arith.constant 0 : index
    %10 = vector.load %arg2[%c0_8, %c0_9] : memref<2x32xf32, #tpu.memory_space<vmem>>, vector<2x32xf32>
    %c0_10 = arith.constant 0 : index
    %c32 = arith.constant 32 : index
    %11 = vector.load %arg11[%c0_10, %c32] : memref<2x64xf32, #tpu.memory_space<vmem>>, vector<2x32xf32>
    tpu.vector_store %arg11[%c0_10, %c32], %10 {strides = array<i32>} : memref<2x64xf32, #tpu.memory_space<vmem>>, vector<2x32xf32>,
    %c0_11 = arith.constant 0 : index
    %c0_12 = arith.constant 0 : index
    %12 = vector.load %arg11[%c0_11, %c0_12] : memref<2x64xf32, #tpu.memory_space<vmem>>, vector<2x64xf32>
    %c0_13 = arith.constant 0 : index
    %c0_14 = arith.constant 0 : index
    %13 = vector.load %arg4[%c0_13, %c0_14] : memref<64x128xf32, #tpu.memory_space<vmem>>, vector<64x128xf32>
    %cst = arith.constant dense<0.000000e+00> : vector<2x128xf32>
    %14 = tpu.matmul %12, %13, %cst {dimension_numbers = #tpu.dot_dimension_numbers<[1], [0], [0], [1], [0, 0, 1, 1], [], []>} : vector<2x64xf32>, vector<64x128xf32>, vector<2x128xf32> -> vector<2x128xf32>
    %c0_15 = arith.constant 0 : index
    %c0_16 = arith.constant 0 : index
    %15 = vector.load %arg5[%c0_15, %c0_16] : memref<1x128xf32, #tpu.memory_space<vmem>>, vector<1x128xf32>
    %16 = vector.broadcast %15 : vector<1x128xf32> to vector<2x128xf32>
    %17 = arith.addf %14, %16 : vector<2x128xf32>
    %18 = vector.extract_strided_slice %17 {offsets = [0, 0], sizes = [2, 32], strides = [1, 1]} : vector<2x128xf32> to vector<2x32xf32>
    %19 = arith.negf %18 : vector<2x32xf32>
    %20 = math.exp %19 : vector<2x32xf32>
    %cst_17 = arith.constant 1.000000e+00 : f32
    %21 = vector.broadcast %cst_17 : f32 to vector<2x32xf32>
    %22 = arith.addf %21, %20 : vector<2x32xf32>
    %23 = arith.divf %21, %22 : vector<2x32xf32>
    %24 = vector.extract_strided_slice %17 {offsets = [0, 32], sizes = [2, 32], strides = [1, 1]} : vector<2x128xf32> to vector<2x32xf32>
    %25 = arith.negf %24 : vector<2x32xf32>
    %26 = math.exp %25 : vector<2x32xf32>
    %cst_18 = arith.constant 1.000000e+00 : f32
    %27 = vector.broadcast %cst_18 : f32 to vector<2x32xf32>
    %28 = arith.addf %27, %26 : vector<2x32xf32>
    %29 = arith.divf %27, %28 : vector<2x32xf32>
    %30 = vector.extract_strided_slice %17 {offsets = [0, 64], sizes = [2, 32], strides = [1, 1]} : vector<2x128xf32> to vector<2x32xf32>
    %31 = math.tanh %30 : vector<2x32xf32>
    %32 = vector.extract_strided_slice %17 {offsets = [0, 96], sizes = [2, 32], strides = [1, 1]} : vector<2x128xf32> to vector<2x32xf32>
    %33 = arith.negf %32 : vector<2x32xf32>
    %34 = math.exp %33 : vector<2x32xf32>
    %cst_19 = arith.constant 1.000000e+00 : f32
    %35 = vector.broadcast %cst_19 : f32 to vector<2x32xf32>
    %36 = arith.addf %35, %34 : vector<2x32xf32>
    %37 = arith.divf %35, %36 : vector<2x32xf32>
    %c0_20 = arith.constant 0 : index
    %c0_21 = arith.constant 0 : index
    %38 = vector.load %arg3[%c0_20, %c0_21] : memref<2x32xf32, #tpu.memory_space<vmem>>, vector<2x32xf32>
    %39 = arith.mulf %29, %38 : vector<2x32xf32>
    %40 = arith.mulf %23, %31 : vector<2x32xf32>
    %41 = arith.addf %39, %40 : vector<2x32xf32>
    %42 = math.tanh %41 : vector<2x32xf32>
    %43 = arith.mulf %37, %42 : vector<2x32xf32>
    %c0_22 = arith.constant 0 : index
    %c0_23 = arith.constant 0 : index
    %44 = vector.load %arg6[%c0_22, %c0_23] : memref<32x8xf32, #tpu.memory_space<vmem>>, vector<32x8xf32>
    %cst_24 = arith.constant dense<0.000000e+00> : vector<2x8xf32>
    %45 = tpu.matmul %43, %44, %cst_24 {dimension_numbers = #tpu.dot_dimension_numbers<[1], [0], [0], [1], [0, 0, 1, 1], [], []>} : vector<2x32xf32>, vector<32x8xf32>, vector<2x8xf32> -> vector<2x8xf32>
    %c0_25 = arith.constant 0 : index
    %c0_26 = arith.constant 0 : index
    %46 = vector.load %arg7[%c0_25, %c0_26] : memref<1x8xf32, #tpu.memory_space<vmem>>, vector<1x8xf32>
    %47 = vector.broadcast %46 : vector<1x8xf32> to vector<2x8xf32>
    %48 = arith.addf %45, %47 : vector<2x8xf32>
    %cst_27 = arith.constant dense<0xFF800000> : vector<2xf32>
    %49 = vector.multi_reduction <maximumf>, %48, %cst_27 [1] : vector<2x8xf32> to vector<2xf32>
    %50 = vector.shape_cast %49 : vector<2xf32> to vector<2x1xf32>
    %51 = vector.broadcast %50 : vector<2x1xf32> to vector<2x8xf32>
    %52 = arith.subf %48, %51 : vector<2x8xf32>
    %53 = math.exp %52 : vector<2x8xf32>
    %cst_28 = arith.constant dense<0.000000e+00> : vector<2xf32>
    %54 = vector.multi_reduction <add>, %53, %cst_28 [1] : vector<2x8xf32> to vector<2xf32>
    %55 = vector.shape_cast %54 : vector<2xf32> to vector<2x1xf32>
    %56 = math.log %55 : vector<2x1xf32>
    %57 = arith.addf %56, %50 : vector<2x1xf32>
    %58 = vector.broadcast %57 : vector<2x1xf32> to vector<2x8xf32>
    %59 = arith.subf %48, %58 : vector<2x8xf32>
    %c0_29 = arith.constant 0 : index
    %c0_30 = arith.constant 0 : index
    %60 = vector.load %arg8[%c0_29, %c0_30] : memref<2x8xf32, #tpu.memory_space<vmem>>, vector<2x8xf32>
    tpu.vector_store %arg8[%c0_29, %c0_30], %59 {strides = array<i32>} : memref<2x8xf32, #tpu.memory_space<vmem>>, vector<2x8xf32>,
    %c0_31 = arith.constant 0 : index
    %c0_32 = arith.constant 0 : index
    %61 = vector.load %arg9[%c0_31, %c0_32] : memref<2x32xf32, #tpu.memory_space<vmem>>, vector<2x32xf32>
    tpu.vector_store %arg9[%c0_31, %c0_32], %43 {strides = array<i32>} : memref<2x32xf32, #tpu.memory_space<vmem>>, vector<2x32xf32>,
    %c0_33 = arith.constant 0 : index
    %c0_34 = arith.constant 0 : index
    %62 = vector.load %arg10[%c0_33, %c0_34] : memref<2x32xf32, #tpu.memory_space<vmem>>, vector<2x32xf32>
    tpu.vector_store %arg10[%c0_33, %c0_34], %41 {strides = array<i32>} : memref<2x32xf32, #tpu.memory_space<vmem>>, vector<2x32xf32>,
    return
  }
}

</mosaic_0001>

<llo_original>
// kernel: discriminator_lstm_forward.1
$region0: #{discriminator_lstm_forward.1}
  #allocation0 [shape = 'u32[]', space=smem, size = 0x4, offset = 0x4, fixed_abs, tag = 'smem constant byte address 0x4 - core index']
  #allocation1 [shape = 'u32[144,128]{1,0:T(1,128)}', space=vmem, size = 0x12000, scoped, tag = 'internal scratch']
  #allocation2 [shape = 'f32[2,64]{1,0:T(2,128)}', space=vmem, size = 0x400, scoped, tag = 'scratch operand']
  %s0 = inlined_call_operand.vmem [shape: s32[2], index: 0, kind: input, shape index: {}]
  %s1 = inlined_call_operand.vmem [shape: f32[16,1,32], index: 1, kind: input, shape index: {}]
  %s2 = inlined_call_operand.vmem [shape: f32[2,32], index: 2, kind: input, shape index: {}, may-alias: {2,9}]
  %s3 = inlined_call_operand.vmem [shape: f32[2,32], index: 3, kind: input, shape index: {}, may-alias: {3,10}]
  %s4 = inlined_call_operand.hbm [shape: f32[64,128], index: 4, kind: input, shape index: {}]
  %s5 = inlined_call_operand.vmem [shape: f32[1,128], index: 5, kind: input, shape index: {}]
  %s6 = inlined_call_operand.vmem [shape: f32[32,8], index: 6, kind: input, shape index: {}]
  %s7 = inlined_call_operand.vmem [shape: f32[1,8], index: 7, kind: input, shape index: {}]
  %s8 = inlined_call_operand.hbm [shape: f32[2,8], index: 8, kind: output, shape index: {0}]
  %s9 = inlined_call_operand.vmem [shape: f32[2,32], index: 9, kind: output, shape index: {1}, may-alias: {2,9}]
  %s10 = inlined_call_operand.vmem [shape: f32[2,32], index: 10, kind: output, shape index: {2}, may-alias: {3,10}]
  %11 = xla_tuple %s8, %s9, %s10
  %s12 = sld [smem:[#allocation0]]
  $region66: #{discriminator_lstm_forward.1} parent=0
    _
  %s14 = ssub.s32 1, %s12
  %s15 = scalar_select 0, %s14, %s12
  $region1: #{discriminator_lstm_forward.1} parent=0
    #allocation3 [shape = 'u8[512]{0}', space=smem, size = 0x200, scoped, tag = 'input window, operand 0, single buffered']
    #allocation4 [shape = 's32[1]{0}', space=sflag, size = 0x4, scoped, tag = 'scoped memory for discriminator_lstm_forward.1']
    #allocation5 [shape = 's32[1]{0}', space=sflag, size = 0x4, scoped, tag = 'scoped memory for discriminator_lstm_forward.1']
    #allocation6 [shape = 's32[1]{0}', space=sflag, size = 0x4, scoped, tag = 'scoped memory for discriminator_lstm_forward.1']
    #allocation7 [shape = 'u8[32768]{0}', space=vmem, size = 0x8000, scoped, tag = 'input window, operand 4, single buffered']
    #allocation8 [shape = 'u8[1024]{0}', space=vmem, size = 0x400, scoped, tag = 'output window, operand 0, single buffered']
    %16 = vsyncpa [#allocation6], 0
    %17 = vsyncpa [#allocation4], 0
    %18 = vsyncpa [#allocation5], 0
    // Predicated region
    $region2: #{discriminator_lstm_forward.1} parent=1 // pred_check
      _
    $region3: #{discriminator_lstm_forward.1} parent=1 // pred_check_branch
      %20 = sbr.rel (0) target = $region5
    $region4: #{discriminator_lstm_forward.1} parent=1 // pred_region
      %s22 = ssub.s32 16, 16
      %23 = vsyncadd [#allocation6], %s22
      %s25 = sshll.u32 %s0, 4
      %s26 = int_to_ptr.vmem [resolvable:$true] %s25
      %28 = dma.vmem_to_smem %s26, 16, [#allocation3], [#allocation6]
    $region5: #{discriminator_lstm_forward.1} parent=1 // pred_fallthru
      _
    // Predicated region
    $region6: #{discriminator_lstm_forward.1} parent=1 // pred_check
      _
    $region7: #{discriminator_lstm_forward.1} parent=1 // pred_check_branch
      %30 = sbr.rel (0) target = $region9
    $region8: #{discriminator_lstm_forward.1} parent=1 // pred_region
      _
    $region9: #{discriminator_lstm_forward.1} parent=1 // pred_fallthru
      _
    // Predicated region
    $region10: #{discriminator_lstm_forward.1} parent=1 // pred_check
      _
    $region11: #{discriminator_lstm_forward.1} parent=1 // pred_check_branch
      %32 = sbr.rel (0) target = $region13
    $region12: #{discriminator_lstm_forward.1} parent=1 // pred_region
      _
    $region13: #{discriminator_lstm_forward.1} parent=1 // pred_fallthru
      _
    // Predicated region
    $region14: #{discriminator_lstm_forward.1} parent=1 // pred_check
      _
    $region15: #{discriminator_lstm_forward.1} parent=1 // pred_check_branch
      %34 = sbr.rel (0) target = $region17
    $region16: #{discriminator_lstm_forward.1} parent=1 // pred_region
      _
    $region17: #{discriminator_lstm_forward.1} parent=1 // pred_fallthru
      _
    // Predicated region
    $region18: #{discriminator_lstm_forward.1} parent=1 // pred_check
      _
    $region19: #{discriminator_lstm_forward.1} parent=1 // pred_check_branch
      %36 = sbr.rel (0) target = $region21
    $region20: #{discriminator_lstm_forward.1} parent=1 // pred_region
      %s38 = ssub.s32 1024, 1024
      %39 = vsyncadd [#allocation4], %s38
      %s40 = sshll.u32 [#allocation7], 4
      %s41 = int_to_ptr.vmem [resolvable:$true] %s40
      %46 = dma.hbm_to_vmem [thread:$0]  %s4, 1024, %s41, [#allocation4], 128, 128, 8
    $region21: #{discriminator_lstm_forward.1} parent=1 // pred_fallthru
      _
    // Predicated region
    $region22: #{discriminator_lstm_forward.1} parent=1 // pred_check
      _
    $region23: #{discriminator_lstm_forward.1} parent=1 // pred_check_branch
      %48 = sbr.rel (0) target = $region25
    $region24: #{discriminator_lstm_forward.1} parent=1 // pred_region
      _
    $region25: #{discriminator_lstm_forward.1} parent=1 // pred_fallthru
      _
    // Predicated region
    $region26: #{discriminator_lstm_forward.1} parent=1 // pred_check
      _
    $region27: #{discriminator_lstm_forward.1} parent=1 // pred_check_branch
      %50 = sbr.rel (0) target = $region29
    $region28: #{discriminator_lstm_forward.1} parent=1 // pred_region
      _
    $region29: #{discriminator_lstm_forward.1} parent=1 // pred_fallthru
      _
    // Predicated region
    $region30: #{discriminator_lstm_forward.1} parent=1 // pred_check
      _
    $region31: #{discriminator_lstm_forward.1} parent=1 // pred_check_branch
      %52 = sbr.rel (0) target = $region33
    $region32: #{discriminator_lstm_forward.1} parent=1 // pred_region
      _
    $region33: #{discriminator_lstm_forward.1} parent=1 // pred_fallthru
      _
    // Predicated region
    $region34: #{discriminator_lstm_forward.1} parent=1 // pred_check
      _
    $region35: #{discriminator_lstm_forward.1} parent=1 // pred_check_branch
      %54 = sbr.rel (0) target = $region37
    $region36: #{discriminator_lstm_forward.1} parent=1 // pred_region
      %55 = dma.done [#allocation6], 16
    $region37: #{discriminator_lstm_forward.1} parent=1 // pred_fallthru
      _
    // Predicated region
    $region38: #{discriminator_lstm_forward.1} parent=1 // pred_check
      _
    $region39: #{discriminator_lstm_forward.1} parent=1 // pred_check_branch
      %57 = sbr.rel (0) target = $region41
    $region40: #{discriminator_lstm_forward.1} parent=1 // pred_region
      %58 = dma.done [#allocation4], 1024
    $region41: #{discriminator_lstm_forward.1} parent=1 // pred_fallthru
      _
    %59 = sfence
    %s60 = sld [smem:[#allocation3]]
    %s61 = scalar_lea.vmem %s1, %s60
    %v62 = vld [vmem:[%s61] sm:$0x1]
    %vm63 = vcmask 253952
    %64 = vst.msk [vmem:[#allocation2] sm:$0x1] %vm63, %v62
    %s65 = sld [smem:[#allocation3 + $0x1]]
    %s66 = scalar_lea.vmem %s1, %s65
    %v67 = vld [vmem:[%s66] sm:$0x1]
    %68 = vst.msk [vmem:[#allocation2 + $0x1] sm:$0x1] %vm63, %v67
    %v69 = vld [vmem:[%s2] sm:$0x3]
    %71 = vrot.lane.b32.xlu0 %v69, 32
    %v72 = vpop.permute.xlu0 %71
    %vm74 = vcmask 517376
    %75 = vst.msk [vmem:[#allocation2] sm:$0x3] %vm74, %v72
    %v76 = vld [vmem:[#allocation2] sm:$0x3]
    %v77 = vld [vmem:[#allocation7] sm:$0xff]
    %v78 = vld [vmem:[#allocation7 + $0x8] sm:$0xff]
    %v79 = vld [vmem:[#allocation7 + $0x10] sm:$0xff]
    %v80 = vld [vmem:[#allocation7 + $0x18] sm:$0xff]
    %v81 = vld [vmem:[#allocation7 + $0x20] sm:$0xff]
    %v82 = vld [vmem:[#allocation7 + $0x28] sm:$0xff]
    %v83 = vld [vmem:[#allocation7 + $0x30] sm:$0xff]
    %v84 = vld [vmem:[#allocation7 + $0x38] sm:$0xff]
    %v85 = vld [vmem:[%s5] sm:$0x1]
    %v87 = vlaneseq
    %v88 = vshrl.u32 %v87, 7
    %v89 = vsub.s32 0, %v88
    %v90 = vrot.slane %v85, %v89
    %vm92 = vcmask 523264
    %v94 = vsel %vm92, %v76, 0
    %96 = vmatprep.subr.mxu0 0.0
    %97 = vmatpush1.msra.mxu0 %v77
    %98 = vmatprep.subr.mxu0 0.0
    %99 = vmatpush1.msra.mxu0 %v78
    %100 = vmatprep.subr.mxu0 0.0
    %101 = vmatpush1.msra.mxu0 %v79
    %102 = vmatprep.subr.mxu0 0.0
    %103 = vmatpush1.msra.mxu0 %v80
    %104 = vmatprep.subr.mxu0 0.0
    %105 = vmatpush1.msra.mxu0 %v81
    %106 = vmatprep.subr.mxu0 0.0
    %107 = vmatpush1.msra.mxu0 %v82
    %108 = vmatprep.subr.mxu0 0.0
    %109 = vmatpush1.msra.mxu0 %v83
    %110 = vmatprep.subr.mxu0 0.0
    %111 = vmatpush1.msra.mxu0 %v84
    %112 = vmatprep.subr.mxu0 0.0
    %113 = vmatpush1.msra.mxu0 0.0
    %114 = vmatprep.subr.mxu0 0.0
    %115 = vmatpush1.msra.mxu0 0.0
    %116 = vmatprep.subr.mxu0 0.0
    %117 = vmatpush1.msra.mxu0 0.0
    %118 = vmatprep.subr.mxu0 0.0
    %119 = vmatpush1.msra.mxu0 0.0
    %120 = vmatprep.subr.mxu0 0.0
    %121 = vmatpush1.msra.mxu0 0.0
    %122 = vmatprep.subr.mxu0 0.0
    %123 = vmatpush1.msra.mxu0 0.0
    %124 = vmatprep.subr.mxu0 0.0
    %125 = vmatpush1.msra.mxu0 0.0
    %126 = vmatprep.subr.mxu0 0.0
    %127 = vmatpush1.msra.mxu0 0.0
    %128 = vmatprep.subr.mxu0 0.0
    %129 = vmatpush1.msra.mxu0 0.0
    %130 = vmatprep.subr.mxu0 0.0
    %131 = vmatpush1.msra.mxu0 0.0
    %132 = vmatprep.subr.mxu0 0.0
    %133 = vmatpush1.msra.mxu0 0.0
    %134 = vmatprep.subr.mxu0 0.0
    %135 = vmatpush1.msra.mxu0 0.0
    %136 = vmatprep.subr.mxu0 0.0
    %137 = vmatpush1.msra.mxu0 0.0
    %138 = vmatprep.subr.mxu0 0.0
    %139 = vmatpush1.msra.mxu0 0.0
    %140 = vmatprep.subr.mxu0 0.0
    %141 = vmatpush1.msra.mxu0 0.0
    %142 = vmatprep.subr.mxu0 0.0
    %143 = vmatpush1.msra.mxu0 0.0
    %144 = vmatprep.subr.mxu0 0.0
    %145 = vmatpush1.msra.mxu0 0.0
    %146 = vmatprep.subr.mxu0 0.0
    %147 = vmatpush1.msra.mxu0 0.0
    %148 = vmatprep.subr.mxu0 0.0
    %149 = vmatpush1.msra.mxu0 0.0
    %150 = vmatprep.subr.mxu0 0.0
    %151 = vmatpush1.msra.mxu0 0.0
    %152 = vmatprep.subr.mxu0 0.0
    %153 = vmatpush1.msra.mxu0 0.0
    %154 = vmatprep.subr.mxu0 0.0
    %155 = vmatpush1.msra.mxu0 0.0
    %156 = vmatprep.subr.mxu0 0.0
    %157 = vmatpush1.msra.mxu0 0.0
    %158 = vmatprep.subr.mxu0 0.0
    %159 = vmatpush1.msra.mxu0 0.0
    %160 = vmatprep.mubr.f32.mxu0 0.0
    %161 = vmatmul.mubr.f32.gmra.mrb[0].mxu0 %v94
    %v162 = vpop.f32.mrb[0].mxu0
    %v163 = vadd.f32 %v90, %v162
    %v164 = vpop.f32.mrb[0].mxu0
    %165 = vdwg.mxu0
    %v166 = vxor.u32 %v163, 2147483648
    %v167 = vmul.f32 %v166, 1.442695
    %v168 = vpow.pop %v167
    %v169 = vadd.f32 %v168, 1.0
    %v170 = vrcp.pop %v169
    %v171 = vmul.f32 1.0, %v170
    %v172 = vtanh.pop %v163
    %v173 = vld [vmem:[%s3] sm:$0x3]
    %175 = vrot.lane.b32.xlu0 %v173, 32
    %v176 = vpop.permute.xlu0 %175
    %v178 = vmul.f32 %v171, %v176
    %180 = vrot.lane.b32.xlu0 %v172, 64
    %v181 = vpop.permute.xlu0 %180
    %v183 = vmul.f32 %v171, %v181
    %185 = vrot.lane.b32.xlu0 %v183, 32
    %v186 = vpop.permute.xlu0 %185
    %v188 = vadd.f32 %v178, %v186
    %v189 = vtanh.pop %v188
    %191 = vrot.lane.b32.xlu0 %v189, 64
    %v192 = vpop.permute.xlu0 %191
    %v194 = vmul.f32 %v171, %v192
    %v195 = vld [vmem:[%s6] sm:$0xff]
    %v196 = vld [vmem:[%s6 + $0x8] sm:$0xff]
    %v197 = vld [vmem:[%s6 + $0x10] sm:$0xff]
    %v198 = vld [vmem:[%s6 + $0x18] sm:$0xff]
    %v199 = vld [vmem:[%s7] sm:$0x1]
    %v201 = vlaneseq
    %v202 = vshrl.u32 %v201, 7
    %v203 = vsub.s32 0, %v202
    %v204 = vrot.slane %v199, %v203
    %207 = vrot.lane.b32.xlu0 %v194, 32
    %v208 = vpop.permute.xlu0 %207
    %vm209 = vcmask 261120
    %v210 = vsel %vm209, %v208, 0
    %212 = vmatprep.subr.mxu0 0.0
    %213 = vmatpush1.msra.mxu0 %v195
    %214 = vmatprep.subr.mxu0 0.0
    %215 = vmatpush1.msra.mxu0 %v196
    %216 = vmatprep.subr.mxu0 0.0
    %217 = vmatpush1.msra.mxu0 %v197
    %218 = vmatprep.subr.mxu0 0.0
    %219 = vmatpush1.msra.mxu0 %v198
    %220 = vmatprep.subr.mxu0 0.0
    %221 = vmatpush1.msra.mxu0 0.0
    %222 = vmatprep.subr.mxu0 0.0
    %223 = vmatpush1.msra.mxu0 0.0
    %224 = vmatprep.subr.mxu0 0.0
    %225 = vmatpush1.msra.mxu0 0.0
    %226 = vmatprep.subr.mxu0 0.0
    %227 = vmatpush1.msra.mxu0 0.0
    %228 = vmatprep.subr.mxu0 0.0
    %229 = vmatpush1.msra.mxu0 0.0
    %230 = vmatprep.subr.mxu0 0.0
    %231 = vmatpush1.msra.mxu0 0.0
    %232 = vmatprep.subr.mxu0 0.0
    %233 = vmatpush1.msra.mxu0 0.0
    %234 = vmatprep.subr.mxu0 0.0
    %235 = vmatpush1.msra.mxu0 0.0
    %236 = vmatprep.subr.mxu0 0.0
    %237 = vmatpush1.msra.mxu0 0.0
    %238 = vmatprep.subr.mxu0 0.0
    %239 = vmatpush1.msra.mxu0 0.0
    %240 = vmatprep.subr.mxu0 0.0
    %241 = vmatpush1.msra.mxu0 0.0
    %242 = vmatprep.subr.mxu0 0.0
    %243 = vmatpush1.msra.mxu0 0.0
    %244 = vmatprep.subr.mxu0 0.0
    %245 = vmatpush1.msra.mxu0 0.0
    %246 = vmatprep.subr.mxu0 0.0
    %247 = vmatpush1.msra.mxu0 0.0
    %248 = vmatprep.subr.mxu0 0.0
    %249 = vmatpush1.msra.mxu0 0.0
    %250 = vmatprep.subr.mxu0 0.0
    %251 = vmatpush1.msra.mxu0 0.0
    %252 = vmatprep.subr.mxu0 0.0
    %253 = vmatpush1.msra.mxu0 0.0
    %254 = vmatprep.subr.mxu0 0.0
    %255 = vmatpush1.msra.mxu0 0.0
    %256 = vmatprep.subr.mxu0 0.0
    %257 = vmatpush1.msra.mxu0 0.0
    %258 = vmatprep.subr.mxu0 0.0
    %259 = vmatpush1.msra.mxu0 0.0
    %260 = vmatprep.subr.mxu0 0.0
    %261 = vmatpush1.msra.mxu0 0.0
    %262 = vmatprep.subr.mxu0 0.0
    %263 = vmatpush1.msra.mxu0 0.0
    %264 = vmatprep.subr.mxu0 0.0
    %265 = vmatpush1.msra.mxu0 0.0
    %266 = vmatprep.subr.mxu0 0.0
    %267 = vmatpush1.msra.mxu0 0.0
    %268 = vmatprep.subr.mxu0 0.0
    %269 = vmatpush1.msra.mxu0 0.0
    %270 = vmatprep.subr.mxu0 0.0
    %271 = vmatpush1.msra.mxu0 0.0
    %272 = vmatprep.subr.mxu0 0.0
    %273 = vmatpush1.msra.mxu0 0.0
    %274 = vmatprep.subr.mxu0 0.0
    %275 = vmatpush1.msra.mxu0 0.0
    %276 = vmatprep.mubr.f32.mxu0 0.0
    %277 = vmatmul.mubr.f32.gmra.mrb[0].mxu0 %v210
    %v278 = vpop.f32.mrb[0].mxu0
    %v279 = vadd.f32 %v204, %v278
    %v280 = vpop.f32.mrb[0].mxu0
    %281 = vdwg.mxu0
    %vm282 = vcmask 58368
    %v283 = vsel %vm282, %v279, -inf
    %284 = vmax.xlane.f32.xlu0 %v283
    %v285 = vpop.xlane.xlu0 %284
    %v286 = vsub.f32 %v279, %v285
    %v287 = vmul.f32 %v286, 1.442695
    %v288 = vpow.pop %v287
    %v289 = vsel %vm282, %v288, 0.0
    %290 = vadd.xlane.f32.xlu0 %v289
    %v291 = vpop.xlane.xlu0 %290
    %v292 = vlog2.pop %v291
    %v293 = vmul.f32 %v292, 0.6931472
    %v294 = vadd.f32 %v293, %v285
    %v295 = vsub.f32 %v279, %v294
    %296 = vst.msk [vmem:[#allocation8] sm:$0x3] %vm282, %v295
    %vm298 = vcmask 254976
    %299 = vst.msk [vmem:[%s9] sm:$0x3] %vm298, %v208
    %301 = vrot.lane.b32.xlu0 %v188, 96
    %v302 = vpop.permute.xlu0 %301
    %304 = vst.msk [vmem:[%s10] sm:$0x3] %vm298, %v302
    // Predicated region
    $region42: #{discriminator_lstm_forward.1} parent=1 // pred_check
      _
    $region43: #{discriminator_lstm_forward.1} parent=1 // pred_check_branch
      %306 = sbr.rel (0) target = $region45
    $region44: #{discriminator_lstm_forward.1} parent=1 // pred_region
      %s308 = ssub.s32 32, 32
      %309 = vsyncadd [#allocation5], %s308
      %s311 = sshll.u32 [#allocation8], 4
      %s312 = int_to_ptr.vmem [resolvable:$true] %s311
      %314 = dma.vmem_to_hbm [thread:$0]  %s312, 32, %s8, [#allocation5]
    $region45: #{discriminator_lstm_forward.1} parent=1 // pred_fallthru
      _
    // Predicated region
    $region46: #{discriminator_lstm_forward.1} parent=1 // pred_check
      _
    $region47: #{discriminator_lstm_forward.1} parent=1 // pred_check_branch
      %316 = sbr.rel (0) target = $region49
    $region48: #{discriminator_lstm_forward.1} parent=1 // pred_region
      _
    $region49: #{discriminator_lstm_forward.1} parent=1 // pred_fallthru
      _
    // Predicated region
    $region50: #{discriminator_lstm_forward.1} parent=1 // pred_check
      _
    $region51: #{discriminator_lstm_forward.1} parent=1 // pred_check_branch
      %318 = sbr.rel (0) target = $region53
    $region52: #{discriminator_lstm_forward.1} parent=1 // pred_region
      _
    $region53: #{discriminator_lstm_forward.1} parent=1 // pred_fallthru
      _
    // Predicated region
    $region54: #{discriminator_lstm_forward.1} parent=1 // pred_check
      _
    $region55: #{discriminator_lstm_forward.1} parent=1 // pred_check_branch
      %320 = sbr.rel (0) target = $region57
    $region56: #{discriminator_lstm_forward.1} parent=1 // pred_region
      %321 = dma.done [#allocation5], 32
    $region57: #{discriminator_lstm_forward.1} parent=1 // pred_fallthru
      _
    // Predicated region
    $region58: #{discriminator_lstm_forward.1} parent=1 // pred_check
      _
    $region59: #{discriminator_lstm_forward.1} parent=1 // pred_check_branch
      %323 = sbr.rel (0) target = $region61
    $region60: #{discriminator_lstm_forward.1} parent=1 // pred_region
      _
    $region61: #{discriminator_lstm_forward.1} parent=1 // pred_fallthru
      _
    // Predicated region
    $region62: #{discriminator_lstm_forward.1} parent=1 // pred_check
      _
    $region63: #{discriminator_lstm_forward.1} parent=1 // pred_check_branch
      %325 = sbr.rel (0) target = $region65
    $region64: #{discriminator_lstm_forward.1} parent=1 // pred_region
      _
    $region65: #{discriminator_lstm_forward.1} parent=1 // pred_fallthru
      _
    %326 = vsyncpa [#allocation4], 1
    %327 = vsyncpa [#allocation5], 1
    %328 = vsyncpa [#allocation6], 1

</llo_original>
